<compile_context>
chip_gen: v5e
topology: v5e:2x2
jax: 0.10.0
libtpu: 0.0.40
codegen_flags: <defaults>
</compile_context>

<pallas_src>
import functools

import jax
import jax.numpy as jnp
from jax.experimental import pallas as pl
from jax.experimental.pallas import tpu as pltpu


def _round_up(x, m):
    return (x + m - 1) // m * m


def _gat_sample_kernel(featT_ref, adjT_ref, w8_ref, b8_ref, o_ref, *,
                       n_valid, k_norm):
    """o[0, i] = p1[i] for i < n_valid, 0 for padded columns.

    featT_ref : [Fp, Np]  features^T (nodes on the lane axis)
    adjT_ref  : [Np, Np]  adjT[src, dst] = 1 for edge src -> dst
    w8_ref    : [8,  Fp]  row 0 = w_l, row 1 = w_r, rows 2..7 = 0
    b8_ref    : [8,  1 ]  row 0 = b_l, row 1 = b_r, rows 2..7 = 0
    """
    featT = featT_ref[...]
    adjT = adjT_ref[...]

    # Both linear projections in one MXU matmul: row 0 = feat_src, row 1 = feat_dst.
    s = jnp.dot(w8_ref[...], featT,
                preferred_element_type=jnp.float32) + b8_ref[...]        # [8, Np]
    # Graph aggregation (copy_u + sum over incoming edges); row 1 is what we need.
    d = jnp.dot(s, adjT, preferred_element_type=jnp.float32)             # [8, Np]

    feat_src = s[0:1, :]                                                 # [1, Np]
    feat_d = jnp.maximum(d[1:2, :] + feat_src, 0.0) + 1.0                # [1, Np]
    g_u = jnp.maximum(feat_src, 0.0) + 1.0                               # [1, Np]

    # in_degrees().clamp(min=1): in-degree of node i = column sum of adjT.
    degree = jnp.maximum(jnp.sum(adjT, axis=0, keepdims=True), 1.0)      # [1, Np]
    p1 = jnp.sqrt(degree) * feat_d * g_u                                 # [1, Np]

    # Zero padded node columns so they do not pollute the normalization sum.
    col = jax.lax.broadcasted_iota(jnp.int32, p1.shape, 1)
    p1 = jnp.where(col < n_valid, p1, 0.0)

    p1 = p1 / jnp.sum(p1, keepdims=True) * k_norm                        # [1, Np]
    o_ref[...] = p1.astype(o_ref.dtype)


def gat_sample_forward(feat, adj, w_l, b_l, w_r, b_r):
    """feat [N, F]; adj [N, N] dense with adj[dst, src] != 0 for edge src -> dst;
    w_l/w_r [1, F]; b_l/b_r [1].  Returns p1 [N, 1] (matches the torch module)."""
    n, f = feat.shape
    np_ = _round_up(n, 128)   # node axis -> lanes
    fp = _round_up(f, 128)    # feature axis -> matmul K

    # Lane-major, lane-padded operands.  All zero padding is mathematically
    # inert; padded node columns are explicitly masked in the kernel.
    featT = jnp.zeros((fp, np_), jnp.float32).at[:f, :n].set(feat.T)
    adjT = jnp.zeros((np_, np_), jnp.float32).at[:n, :n].set(adj.T)
    w8 = (jnp.zeros((8, fp), jnp.float32)
          .at[0, :f].set(w_l[0])
          .at[1, :f].set(w_r[0]))
    b8 = (jnp.zeros((8, 1), jnp.float32)
          .at[0, 0].set(b_l[0])
          .at[1, 0].set(b_r[0]))

    kernel = functools.partial(_gat_sample_kernel,
                               n_valid=n, k_norm=float(int(n * 0.25)))

    # Single invocation, no grid, everything resident in VMEM.
    p1_row = pl.pallas_call(
        kernel,
        out_shape=jax.ShapeDtypeStruct((1, np_), jnp.float32),
        in_specs=[pl.BlockSpec(memory_space=pltpu.MemorySpace.VMEM)] * 4,
        out_specs=pl.BlockSpec(memory_space=pltpu.MemorySpace.VMEM),
    )(featT, adjT, w8, b8)

    return p1_row[0, :n].reshape(n, 1)


if __name__ == "__main__":
    key = jax.random.PRNGKey(0)
    n_nodes, in_feats = 100, 32   # small graph; exercises the lane-padding path

    key, kf, ka, kwl, kwr, kbl, kbr = jax.random.split(key, 7)
    feat = jax.random.normal(kf, (n_nodes, in_feats), jnp.float32)

    # Deterministic random directed graph: adj[dst, src] = 1 for edge src -> dst.
    adj = (jax.random.uniform(ka, (n_nodes, n_nodes)) > 0.8).astype(jnp.float32)

    # xavier_normal_ with gain=calculate_gain('relu') for the two 1-output Linears;
    # biases keep the default nn.Linear uniform init (reset_parameters only touches W).
    gain = 2.0 ** 0.5
    std = gain * (2.0 / (in_feats + 1)) ** 0.5
    w_l = std * jax.random.normal(kwl, (1, in_feats), jnp.float32)
    w_r = std * jax.random.normal(kwr, (1, in_feats), jnp.float32)
    bound = 1.0 / (in_feats ** 0.5)
    b_l = jax.random.uniform(kbl, (1,), jnp.float32, -bound, bound)
    b_r = jax.random.uniform(kbr, (1,), jnp.float32, -bound, bound)

    out = gat_sample_forward(feat, adj, w_l, b_l, w_r, b_r)
    out = jax.block_until_ready(out)

    # Pure-JAX reference of the torch module.
    feat_src = feat @ w_l.T + b_l            # [N, 1]
    feat_dst = feat @ w_r.T + b_r            # [N, 1]
    feat_d = adj @ feat_dst                  # sum over incoming edges
    feat_d = jnp.maximum(feat_d + feat_src, 0.0) + 1.0
    g_u = jnp.maximum(feat_src, 0.0) + 1.0
    degree = jnp.maximum(jnp.sum(adj, axis=1), 1.0)
    p1_ref = jnp.sqrt(degree) * feat_d[:, 0] * g_u[:, 0]
    p1_ref = (p1_ref / jnp.sum(p1_ref) * int(n_nodes * 0.25))[:, None]

    assert out.shape == (n_nodes, 1)
    assert jnp.allclose(out, p1_ref, atol=1e-4, rtol=1e-4)

    # TODO(synk): training-mode behavior (if any dropout/grad path were added) is
    # out of scope; this implements the inference forward only.
    print("KERNEL_OK")
</pallas_src>

<mosaic_0001>
module attributes {stable_mosaic.version = 11 : i64} {
  func.func @_gat_sample_kernel(%arg0: memref<128x128xf32, #tpu.memory_space<vmem>>, %arg1: memref<128x128xf32, #tpu.memory_space<vmem>>, %arg2: memref<8x128xf32, #tpu.memory_space<vmem>>, %arg3: memref<8x1xf32, #tpu.memory_space<vmem>>, %arg4: memref<1x128xf32, #tpu.memory_space<vmem>>) attributes {dimension_semantics = [], scalar_prefetch = 0 : i64, scratch_operands = 0 : i64, tpu.core_type = #tpu.core_type<tc>} {
    %c0 = arith.constant 0 : index
    %c0_0 = arith.constant 0 : index
    %0 = vector.load %arg0[%c0, %c0_0] : memref<128x128xf32, #tpu.memory_space<vmem>>, vector<128x128xf32>
    %c0_1 = arith.constant 0 : index
    %c0_2 = arith.constant 0 : index
    %1 = vector.load %arg1[%c0_1, %c0_2] : memref<128x128xf32, #tpu.memory_space<vmem>>, vector<128x128xf32>
    %c0_3 = arith.constant 0 : index
    %c0_4 = arith.constant 0 : index
    %2 = vector.load %arg2[%c0_3, %c0_4] : memref<8x128xf32, #tpu.memory_space<vmem>>, vector<8x128xf32>
    %cst = arith.constant dense<0.000000e+00> : vector<8x128xf32>
    %3 = tpu.matmul %2, %0, %cst {dimension_numbers = #tpu.dot_dimension_numbers<[1], [0], [0], [1], [0, 0, 1, 1], [], []>} : vector<8x128xf32>, vector<128x128xf32>, vector<8x128xf32> -> vector<8x128xf32>
    %c0_5 = arith.constant 0 : index
    %c0_6 = arith.constant 0 : index
    %4 = vector.load %arg3[%c0_5, %c0_6] : memref<8x1xf32, #tpu.memory_space<vmem>>, vector<8x1xf32>
    %5 = vector.broadcast %4 : vector<8x1xf32> to vector<8x128xf32>
    %6 = arith.addf %3, %5 : vector<8x128xf32>
    %cst_7 = arith.constant dense<0.000000e+00> : vector<8x128xf32>
    %7 = tpu.matmul %6, %1, %cst_7 {dimension_numbers = #tpu.dot_dimension_numbers<[1], [0], [0], [1], [0, 0, 1, 1], [], []>} : vector<8x128xf32>, vector<128x128xf32>, vector<8x128xf32> -> vector<8x128xf32>
    %8 = vector.extract_strided_slice %6 {offsets = [0, 0], sizes = [1, 128], strides = [1, 1]} : vector<8x128xf32> to vector<1x128xf32>
    %9 = vector.extract_strided_slice %7 {offsets = [1, 0], sizes = [1, 128], strides = [1, 1]} : vector<8x128xf32> to vector<1x128xf32>
    %10 = arith.addf %9, %8 : vector<1x128xf32>
    %cst_8 = arith.constant 0.000000e+00 : f32
    %11 = vector.broadcast %cst_8 : f32 to vector<1x128xf32>
    %12 = arith.maximumf %10, %11 : vector<1x128xf32>
    %cst_9 = arith.constant 1.000000e+00 : f32
    %13 = vector.broadcast %cst_9 : f32 to vector<1x128xf32>
    %14 = arith.addf %12, %13 : vector<1x128xf32>
    %cst_10 = arith.constant 0.000000e+00 : f32
    %15 = vector.broadcast %cst_10 : f32 to vector<1x128xf32>
    %16 = arith.maximumf %8, %15 : vector<1x128xf32>
    %cst_11 = arith.constant 1.000000e+00 : f32
    %17 = vector.broadcast %cst_11 : f32 to vector<1x128xf32>
    %18 = arith.addf %16, %17 : vector<1x128xf32>
    %cst_12 = arith.constant dense<0.000000e+00> : vector<128xf32>
    %19 = vector.multi_reduction <add>, %1, %cst_12 [0] : vector<128x128xf32> to vector<128xf32>
    %20 = vector.shape_cast %19 : vector<128xf32> to vector<1x128xf32>
    %cst_13 = arith.constant 1.000000e+00 : f32
    %21 = vector.broadcast %cst_13 : f32 to vector<1x128xf32>
    %22 = arith.maximumf %20, %21 : vector<1x128xf32>
    %23 = math.sqrt %22 : vector<1x128xf32>
    %24 = arith.mulf %23, %14 : vector<1x128xf32>
    %25 = arith.mulf %24, %18 : vector<1x128xf32>
    %26 = tpu.iota {dimensions = array<i32: 1>} : vector<1x128xi32>
    %c100_i32 = arith.constant 100 : i32
    %27 = vector.broadcast %c100_i32 : i32 to vector<1x128xi32>
    %28 = arith.cmpi slt, %26, %27 : vector<1x128xi32>
    %cst_14 = arith.constant 0.000000e+00 : f32
    %29 = vector.broadcast %cst_14 : f32 to vector<1x128xf32>
    %30 = arith.select %28, %25, %29 : vector<1x128xi1>, vector<1x128xf32>
    %31 = vector.shape_cast %30 : vector<1x128xf32> to vector<1x1x128xf32>
    %cst_15 = arith.constant dense<0.000000e+00> : vector<1xf32>
    %32 = vector.multi_reduction <add>, %31, %cst_15 [1, 2] : vector<1x1x128xf32> to vector<1xf32>
    %33 = vector.shape_cast %32 : vector<1xf32> to vector<1x1x1xf32>
    %34 = vector.extract %33[0, 0, 0] : f32 from vector<1x1x1xf32>
    %35 = vector.broadcast %34 : f32 to vector<1x1xf32>
    %36 = vector.broadcast %35 : vector<1x1xf32> to vector<1x128xf32>
    %37 = arith.divf %30, %36 : vector<1x128xf32>
    %cst_16 = arith.constant 2.500000e+01 : f32
    %38 = vector.broadcast %cst_16 : f32 to vector<1x128xf32>
    %39 = arith.mulf %37, %38 : vector<1x128xf32>
    %c0_17 = arith.constant 0 : index
    %c0_18 = arith.constant 0 : index
    %40 = vector.load %arg4[%c0_17, %c0_18] : memref<1x128xf32, #tpu.memory_space<vmem>>, vector<1x128xf32>
    tpu.vector_store %arg4[%c0_17, %c0_18], %39 {strides = array<i32>} : memref<1x128xf32, #tpu.memory_space<vmem>>, vector<1x128xf32>,
    return
  }
}

</mosaic_0001>

<llo_original>
// kernel: tpu_custom_call.1
$region0: #{tpu_custom_call.1}
  #allocation0 [shape = 'u32[]', space=smem, size = 0x4, offset = 0x4, fixed_abs, tag = 'smem constant byte address 0x4 - core index']
  #allocation1 [shape = 'u32[72,128]{1,0:T(1,128)}', space=vmem, size = 0x9000, scoped, tag = 'internal scratch']
  %s0 = inlined_call_operand.hbm [shape: f32[128,128], index: 0, kind: input, shape index: {}]
  %s1 = inlined_call_operand.hbm [shape: f32[128,128], index: 1, kind: input, shape index: {}]
  %s2 = inlined_call_operand.vmem [shape: f32[8,128], index: 2, kind: input, shape index: {}]
  %s3 = inlined_call_operand.vmem [shape: f32[8,1], index: 3, kind: input, shape index: {}]
  %s4 = inlined_call_operand.hbm [shape: f32[1,128], index: 4, kind: output, shape index: {}]
  %s5 = sld [smem:[#allocation0]]
  $region34: #{tpu_custom_call.1} parent=0
    _
  %s7 = ssub.s32 1, %s5
  %s8 = scalar_select 0, %s7, %s5
  $region1: #{tpu_custom_call.1} parent=0
    #allocation2 [shape = 'u8[65536]{0}', space=vmem, size = 0x10000, scoped, tag = 'input window, operand 0, single buffered']
    #allocation3 [shape = 's32[1]{0}', space=sflag, size = 0x4, scoped, tag = 'scoped memory for tpu_custom_call.1']
    #allocation4 [shape = 's32[1]{0}', space=sflag, size = 0x4, scoped, tag = 'scoped memory for tpu_custom_call.1']
    #allocation5 [shape = 'u8[65536]{0}', space=vmem, size = 0x10000, scoped, tag = 'input window, operand 1, single buffered']
    #allocation6 [shape = 's32[1]{0}', space=sflag, size = 0x4, scoped, tag = 'scoped memory for tpu_custom_call.1']
    #allocation7 [shape = 'u8[512]{0}', space=vmem, size = 0x400, scoped, tag = 'output window, operand 0, single buffered']
    %9 = vsyncpa [#allocation3], 0
    %10 = vsyncpa [#allocation6], 0
    %11 = vsyncpa [#allocation4], 0
    // Predicated region
    $region2: #{tpu_custom_call.1} parent=1 // pred_check
      _
    $region3: #{tpu_custom_call.1} parent=1 // pred_check_branch
      %13 = sbr.rel (0) target = $region5
    $region4: #{tpu_custom_call.1} parent=1 // pred_region
      %15 = vsyncadd [#allocation3], 0
      %s16 = sshll.u32 %s0, 4
      %s17 = int_to_ptr.hbm [resolvable:$true] %s16
      %s18 = sshll.u32 [#allocation2], 4
      %s19 = int_to_ptr.vmem [resolvable:$true] %s18
      %24 = dma.hbm_to_vmem [thread:$0]  %s17, 2048, %s19, [#allocation3], 128, 128, 8
    $region5: #{tpu_custom_call.1} parent=1 // pred_fallthru
      _
    // Predicated region
    $region6: #{tpu_custom_call.1} parent=1 // pred_check
      _
    $region7: #{tpu_custom_call.1} parent=1 // pred_check_branch
      %26 = sbr.rel (0) target = $region9
    $region8: #{tpu_custom_call.1} parent=1 // pred_region
      %28 = vsyncadd [#allocation6], 0
      %s29 = sshll.u32 %s1, 4
      %s30 = int_to_ptr.hbm [resolvable:$true] %s29
      %s31 = sshll.u32 [#allocation5], 4
      %s32 = int_to_ptr.vmem [resolvable:$true] %s31
      %37 = dma.hbm_to_vmem [thread:$0]  %s30, 2048, %s32, [#allocation6], 128, 128, 8
    $region9: #{tpu_custom_call.1} parent=1 // pred_fallthru
      _
    // Predicated region
    $region10: #{tpu_custom_call.1} parent=1 // pred_check
      _
    $region11: #{tpu_custom_call.1} parent=1 // pred_check_branch
      %39 = sbr.rel (0) target = $region13
    $region12: #{tpu_custom_call.1} parent=1 // pred_region
      _
    $region13: #{tpu_custom_call.1} parent=1 // pred_fallthru
      _
    // Predicated region
    $region14: #{tpu_custom_call.1} parent=1 // pred_check
      _
    $region15: #{tpu_custom_call.1} parent=1 // pred_check_branch
      %41 = sbr.rel (0) target = $region17
    $region16: #{tpu_custom_call.1} parent=1 // pred_region
      _
    $region17: #{tpu_custom_call.1} parent=1 // pred_fallthru
      _
    // Predicated region
    $region18: #{tpu_custom_call.1} parent=1 // pred_check
      _
    $region19: #{tpu_custom_call.1} parent=1 // pred_check_branch
      %43 = sbr.rel (0) target = $region21
    $region20: #{tpu_custom_call.1} parent=1 // pred_region
      %45 = dma.done [#allocation3], 2048
    $region21: #{tpu_custom_call.1} parent=1 // pred_fallthru
      _
    // Predicated region
    $region22: #{tpu_custom_call.1} parent=1 // pred_check
      _
    $region23: #{tpu_custom_call.1} parent=1 // pred_check_branch
      %47 = sbr.rel (0) target = $region25
    $region24: #{tpu_custom_call.1} parent=1 // pred_region
      %49 = dma.done [#allocation6], 2048
    $region25: #{tpu_custom_call.1} parent=1 // pred_fallthru
      _
    %v50 = vld [vmem:[#allocation2] sm:$0xff]
    %v51 = vld [vmem:[#allocation2 + $0x8] sm:$0xff]
    %v52 = vld [vmem:[#allocation2 + $0x10] sm:$0xff]
    %v53 = vld [vmem:[#allocation2 + $0x18] sm:$0xff]
    %v54 = vld [vmem:[#allocation2 + $0x20] sm:$0xff]
    %v55 = vld [vmem:[#allocation2 + $0x28] sm:$0xff]
    %v56 = vld [vmem:[#allocation2 + $0x30] sm:$0xff]
    %v57 = vld [vmem:[#allocation2 + $0x38] sm:$0xff]
    %v58 = vld [vmem:[#allocation2 + $0x40] sm:$0xff]
    %v59 = vld [vmem:[#allocation2 + $0x48] sm:$0xff]
    %v60 = vld [vmem:[#allocation2 + $0x50] sm:$0xff]
    %v61 = vld [vmem:[#allocation2 + $0x58] sm:$0xff]
    %v62 = vld [vmem:[#allocation2 + $0x60] sm:$0xff]
    %v63 = vld [vmem:[#allocation2 + $0x68] sm:$0xff]
    %v64 = vld [vmem:[#allocation2 + $0x70] sm:$0xff]
    %v65 = vld [vmem:[#allocation2 + $0x78] sm:$0xff]
    %v66 = vld [vmem:[#allocation5] sm:$0xff]
    %v67 = vld [vmem:[#allocation5 + $0x8] sm:$0xff]
    %v68 = vld [vmem:[#allocation5 + $0x10] sm:$0xff]
    %v69 = vld [vmem:[#allocation5 + $0x18] sm:$0xff]
    %v70 = vld [vmem:[#allocation5 + $0x20] sm:$0xff]
    %v71 = vld [vmem:[#allocation5 + $0x28] sm:$0xff]
    %v72 = vld [vmem:[#allocation5 + $0x30] sm:$0xff]
    %v73 = vld [vmem:[#allocation5 + $0x38] sm:$0xff]
    %v74 = vld [vmem:[#allocation5 + $0x40] sm:$0xff]
    %v75 = vld [vmem:[#allocation5 + $0x48] sm:$0xff]
    %v76 = vld [vmem:[#allocation5 + $0x50] sm:$0xff]
    %v77 = vld [vmem:[#allocation5 + $0x58] sm:$0xff]
    %v78 = vld [vmem:[#allocation5 + $0x60] sm:$0xff]
    %v79 = vld [vmem:[#allocation5 + $0x68] sm:$0xff]
    %v80 = vld [vmem:[#allocation5 + $0x70] sm:$0xff]
    %v81 = vld [vmem:[#allocation5 + $0x78] sm:$0xff]
    %v82 = vld [vmem:[%s2] sm:$0xff]
    %v83 = vld [vmem:[%s3] sm:$0xff]
    %85 = vset.pattern.permute.xlu0 0
    %86 = vperm.xlu0 %85, %v83
    %v87 = vpop.permute.xlu0 %86
    %89 = vmatpush.msra.mxu0 %v65
    %90 = vmatpush.msra.mxu0 %v64
    %91 = vmatpush.msra.mxu0 %v63
    %92 = vmatpush.msra.mxu0 %v62
    %93 = vmatpush.msra.mxu0 %v61
    %94 = vmatpush.msra.mxu0 %v60
    %95 = vmatpush.msra.mxu0 %v59
    %96 = vmatpush.msra.mxu0 %v58
    %97 = vmatpush.msra.mxu0 %v57
    %98 = vmatpush.msra.mxu0 %v56
    %99 = vmatpush.msra.mxu0 %v55
    %100 = vmatpush.msra.mxu0 %v54
    %101 = vmatpush.msra.mxu0 %v53
    %102 = vmatpush.msra.mxu0 %v52
    %103 = vmatpush.msra.mxu0 %v51
    %104 = vmatpush.msra.mxu0 %v50
    %105 = vmatmul.f32.gmra.mxu0 %v82
    %v106 = vpop.f32.mrf.mxu0
    %v107 = vadd.f32 %v87, %v106
    %108 = vdwg.mxu0
    %109 = vmatpush.msra.mxu0 %v81
    %110 = vmatpush.msra.mxu0 %v80
    %111 = vmatpush.msra.mxu0 %v79
    %112 = vmatpush.msra.mxu0 %v78
    %113 = vmatpush.msra.mxu0 %v77
    %114 = vmatpush.msra.mxu0 %v76
    %115 = vmatpush.msra.mxu0 %v75
    %116 = vmatpush.msra.mxu0 %v74
    %117 = vmatpush.msra.mxu0 %v73
    %118 = vmatpush.msra.mxu0 %v72
    %119 = vmatpush.msra.mxu0 %v71
    %120 = vmatpush.msra.mxu0 %v70
    %121 = vmatpush.msra.mxu0 %v69
    %122 = vmatpush.msra.mxu0 %v68
    %123 = vmatpush.msra.mxu0 %v67
    %124 = vmatpush.msra.mxu0 %v66
    %125 = vmatmul.f32.gmra.mxu0 %v107
    %v126 = vpop.f32.mrf.mxu0
    %v127 = vadd.f32 0.0, %v126
    %128 = vdwg.mxu0
    %v130 = vrot.slane %v107, 7
    %v132 = vadd.f32 %v127, %v130
    %v133 = vmax.f32 %v132, 0.0
    %v134 = vadd.f32 %v133, 1.0
    %v135 = vmax.f32 %v107, 0.0
    %v136 = vadd.f32 %v135, 1.0
    %v137 = vadd.f32 %v66, %v67
    %v138 = vadd.f32 %v137, %v68
    %v139 = vadd.f32 %v138, %v69
    %v140 = vadd.f32 %v139, %v70
    %v141 = vadd.f32 %v140, %v71
    %v142 = vadd.f32 %v141, %v72
    %v143 = vadd.f32 %v142, %v73
    %v144 = vadd.f32 %v143, %v74
    %v145 = vadd.f32 %v144, %v75
    %v146 = vadd.f32 %v145, %v76
    %v147 = vadd.f32 %v146, %v77
    %v148 = vadd.f32 %v147, %v78
    %v149 = vadd.f32 %v148, %v79
    %v150 = vadd.f32 %v149, %v80
    %v151 = vadd.f32 %v150, %v81
    %v152 = vrot.slane %v151, 4
    %v153 = vadd.f32 %v151, %v152
    %v154 = vrot.slane %v153, 2
    %v155 = vadd.f32 %v153, %v154
    %v156 = vrot.slane %v155, 1
    %v157 = vadd.f32 %v155, %v156
    %v158 = vmax.f32 %v157, 1.0
    %v159 = vrsqrt.pop %v158
    %v160 = vmul.f32 %v159, %v158
    %v161 = vmul.f32 %v160, %v159
    %v162 = vmul.f32 0.5, %v161
    %v163 = vsub.f32 1.5, %v162
    %v164 = vmul.f32 %v159, %v163
    %v165 = vmul.f32 %v158, %v164
    %vm166 = vcmp.eq.f32.partialorder %v158, inf
    %v167 = vsel %vm166, %v158, %v165
    %vm168 = vcmp.eq.f32.partialorder %v158, 0.0
    %v169 = vand.u32 %v158, 2147483648
    %v170 = vsel %vm168, %v169, %v167
    %v171 = vmul.f32 %v170, %v134
    %v173 = vrot.slane %v136, 7
    %v175 = vmul.f32 %v171, %v173
    %v176 = vlaneseq
    %v177 = vand.u32 %v176, 127
    %vm178 = vcmp.lt.s32.totalorder %v177, 100
    %v179 = vsel %vm178, %v175, 0.0
    %v181 = vrot.slane %v179, 1
    %vm183 = vcmask 1040384
    %v184 = vsel %vm183, %v181, 0.0
    %185 = vadd.xlane.f32.xlu0 %v184
    %v186 = vpop.xlane.xlu0 %185
    %v187 = vrot.slane %v186, 4
    %v188 = vadd.f32 %v186, %v187
    %v189 = vrot.slane %v188, 2
    %v190 = vadd.f32 %v188, %v189
    %v191 = vrot.slane %v190, 1
    %v192 = vadd.f32 %v190, %v191
    %s193 = vtos %v192
    %v194 = vstv %s193
    %v195 = vrcp.pop %v194
    %v196 = vmul.f32 %v194, %v195
    %v197 = vsub.f32 1.0, %v196
    %v198 = vmul.f32 %v195, %v197
    %v199 = vadd.f32 %v195, %v198
    %vm200 = vweird.f32 %v194
    %vm201 = vweird.f32 %v195
    %vm202 = vmor %vm200, %vm201
    %v203 = vsel %vm202, %v195, %v199
    %v204 = vand.u32 2147483647, %v194
    %vm205 = vcmp.eq.f32.partialorder %v204, 8.507059e+37
    %v206 = vand.u32 %v194, 2147483648
    %v207 = vor.u32 1.1754944e-38, %v206
    %v208 = vsel %vm205, %v207, %v203
    %v209 = vmul.f32 %v179, %v208
    %v210 = vmul.f32 %v209, 25.0
    %211 = vst [vmem:[#allocation7 - $0x1] sm:$0x2] %v210
    // Predicated region
    $region26: #{tpu_custom_call.1} parent=1 // pred_check
      _
    $region27: #{tpu_custom_call.1} parent=1 // pred_check_branch
      %213 = sbr.rel (0) target = $region29
    $region28: #{tpu_custom_call.1} parent=1 // pred_region
      %215 = vsyncadd [#allocation4], 0
      %s217 = sshll.u32 [#allocation7], 4
      %s218 = int_to_ptr.vmem [resolvable:$true] %s217
      %s219 = sshll.u32 %s4, 4
      %s220 = int_to_ptr.hbm [resolvable:$true] %s219
      %222 = dma.vmem_to_hbm [thread:$0]  %s218, 16, %s220, [#allocation4]
    $region29: #{tpu_custom_call.1} parent=1 // pred_fallthru
      _
    // Predicated region
    $region30: #{tpu_custom_call.1} parent=1 // pred_check
      _
    $region31: #{tpu_custom_call.1} parent=1 // pred_check_branch
      %224 = sbr.rel (0) target = $region33
    $region32: #{tpu_custom_call.1} parent=1 // pred_region
      %226 = dma.done [#allocation4], 16
    $region33: #{tpu_custom_call.1} parent=1 // pred_fallthru
      _
    %227 = vsyncpa [#allocation3], 1
    %228 = vsyncpa [#allocation6], 1
    %229 = vsyncpa [#allocation4], 1

</llo_original>
